<compile_context>
chip_gen: v5e
topology: v5e:2x2
jax: 0.10.0
libtpu: 0.0.40
codegen_flags: <defaults>
</compile_context>

<pallas_src>
import functools

import jax
import jax.numpy as jnp
from jax.experimental import pallas as pl
from jax.experimental.pallas import tpu as pltpu

# Small, TPU-aligned shapes consistent with the module's forward pass.
B = 2      # batch
S = 8      # sequence
H = 128    # hidden_size
I = 256    # intermediate_size


def _mlp_kernel(x_ref, wgu_ref, wd_ref, o_ref, acc_ref, *, block_i):
    n = pl.program_id(1)                      # intermediate (reduction) axis

    @pl.when(n == 0)
    def _():
        acc_ref[...] = jnp.zeros_like(acc_ref)

    # x: (block_m, H) fp32 activations; cast once to bf16 for the MXU.
    x = x_ref[...].astype(jnp.bfloat16)

    # Fused gate|up projection for this intermediate tile: one wide matmul.
    gu = jnp.dot(x, wgu_ref[...], preferred_element_type=jnp.float32)
    g = gu[:, :block_i]          # gate_proj(x) tile (split is 128-lane aligned)
    u = gu[:, block_i:]          # up_proj(x)   tile

    # SiLU(gate) * up in fp32 (EUP handles the sigmoid exp).
    act = (g * jax.nn.sigmoid(g)) * u

    # Partial down_proj for this tile; accumulate in fp32 VMEM.
    acc_ref[...] += jnp.dot(act.astype(jnp.bfloat16), wd_ref[...],
                            preferred_element_type=jnp.float32)

    @pl.when(n == pl.num_programs(1) - 1)
    def _():
        o_ref[...] = acc_ref[...].astype(o_ref.dtype)


def exllama_mlp(x, w_gate, w_up, w_down, *, block_m=None, block_i=None,
                out_dtype=jnp.bfloat16):
    """x: (B, S, H); weights stored as (in_features, out_features)."""
    b, s, h = x.shape
    inter = w_gate.shape[1]
    assert w_up.shape == (h, inter) and w_down.shape == (inter, h)
    assert h % 128 == 0, "hidden_size must be lane-aligned"
    assert inter % 128 == 0, "intermediate_size must be lane-aligned"

    m = b * s

    if block_m is None:
        # Decode-like M: one row slab (single grid step).  Prefill-sized M:
        # 256-row slabs (multiple of the 256-row MXU on v6e/v7x, multiple of
        # 128 on v5e) keep the fp32 accumulator + x/out tiles inside v7x's
        # 64 MiB VMEM while filling the MXU.
        block_m = m if m <= 512 else 256
    if block_i is None:
        # Largest intermediate tile (<= 2048) that divides I; weight slabs
        # stream through VMEM instead of residing whole.
        block_i = inter
        for cand in (2048, 1024, 512, 256, 128):
            if cand <= inter and inter % cand == 0:
                block_i = cand
                break
    assert block_m % 8 == 0 or block_m == m
    assert inter % block_i == 0 and block_i % 128 == 0
    n_i = inter // block_i

    # Pad rows so the row grid divides evenly for general B*S.
    m_pad = pl.cdiv(m, block_m) * block_m
    x2 = x.reshape(m, h).astype(jnp.float32)
    if m_pad != m:
        x2 = jnp.pad(x2, ((0, m_pad - m), (0, 0)))

    # Tile-contiguous fused gate|up layout: [g_tile0 | u_tile0 | g_tile1 | ...]
    # so each grid step DMAs one dense (H, 2*block_i) column slab.
    wg3 = w_gate.astype(jnp.bfloat16).reshape(h, n_i, block_i)
    wu3 = w_up.astype(jnp.bfloat16).reshape(h, n_i, block_i)
    wgu = jnp.concatenate([wg3, wu3], axis=2).reshape(h, 2 * inter)
    wd = w_down.astype(jnp.bfloat16)

    grid = (m_pad // block_m, n_i)   # rows parallel, reduction axis last

    grid_spec = pltpu.PrefetchScalarGridSpec(
        num_scalar_prefetch=0,
        grid=grid,
        in_specs=[
            pl.BlockSpec((block_m, h), lambda i, n: (i, 0)),        # activations
            pl.BlockSpec((h, 2 * block_i), lambda i, n: (0, n)),    # gate|up slab
            pl.BlockSpec((block_i, h), lambda i, n: (n, 0)),        # down slab
        ],
        out_specs=pl.BlockSpec((block_m, h), lambda i, n: (i, 0)),
        scratch_shapes=[pltpu.VMEM((block_m, h), jnp.float32)],     # fp32 acc
    )

    # Rough VMEM footprint (double-buffered streamed tiles + accumulator +
    # the fp32 gu intermediate); cap the request at 64 MiB so it is valid on
    # v7x as well as v5e/v6e.
    out_isize = jnp.dtype(out_dtype).itemsize
    est = (2 * (block_m * h * 4                # x tile (x2 buffers)
                + h * 2 * block_i * 2          # wgu tile
                + block_i * h * 2              # wd tile
                + block_m * h * out_isize)     # out tile
           + block_m * h * 4                   # accumulator
           + block_m * 2 * block_i * 4)        # gu intermediate
    vmem_limit = int(min(max(2 * est, 32 << 20), 64 << 20))

    out = pl.pallas_call(
        functools.partial(_mlp_kernel, block_i=block_i),
        out_shape=jax.ShapeDtypeStruct((m_pad, h), out_dtype),
        grid_spec=grid_spec,
        compiler_params=pltpu.CompilerParams(
            dimension_semantics=("parallel", "arbitrary"),
            vmem_limit_bytes=vmem_limit),
    )(x2, wgu, wd)
    return out[:m].reshape(b, s, h)


def reference_mlp(x, w_gate, w_up, w_down):
    """Plain-JAX reference mirroring the kernel's bf16-weight / fp32-accum math."""
    f32 = jnp.float32
    xb = x.astype(jnp.bfloat16).astype(f32)
    wg = w_gate.astype(jnp.bfloat16).astype(f32)
    wu = w_up.astype(jnp.bfloat16).astype(f32)
    wd = w_down.astype(jnp.bfloat16).astype(f32)
    g = xb @ wg
    u = xb @ wu
    act = (g * jax.nn.sigmoid(g)) * u
    return act.astype(jnp.bfloat16).astype(f32) @ wd


if __name__ == "__main__":
    key = jax.random.PRNGKey(0)
    ks = jax.random.split(key, 4)
    sc = 0.02

    x = jax.random.normal(ks[0], (B, S, H), jnp.float32)
    w_gate = sc * jax.random.normal(ks[1], (H, I), jnp.float32)
    w_up = sc * jax.random.normal(ks[2], (H, I), jnp.float32)
    w_down = sc * jax.random.normal(ks[3], (I, H), jnp.float32)

    out = exllama_mlp(x, w_gate, w_up, w_down)
    jax.block_until_ready(out)

    ref = reference_mlp(x, w_gate, w_up, w_down)
    assert out.shape == (B, S, H)
    assert out.dtype == jnp.bfloat16
    # Output is bf16 (fp32 accumulation); compare in fp32 with bf16-aware tol.
    assert jnp.allclose(out.astype(jnp.float32), ref, atol=2e-3, rtol=2e-2), \
        "mismatch vs reference"

    print("KERNEL_OK")
</pallas_src>

<mosaic_0001>
module attributes {stable_mosaic.version = 11 : i64} {
  func.func @_mlp_kernel(%arg0: i32, %arg1: i32, %arg2: memref<16x128xf32, #tpu.memory_space<vmem>>, %arg3: memref<128x512xbf16, #tpu.memory_space<vmem>>, %arg4: memref<256x128xbf16, #tpu.memory_space<vmem>>, %arg5: memref<16x128xbf16, #tpu.memory_space<vmem>>, %arg6: memref<16x128xf32, #tpu.memory_space<vmem>>) attributes {dimension_semantics = [#tpu.dimension_semantics<parallel>, #tpu.dimension_semantics<arbitrary>], iteration_bounds = array<i64: 1, 1>, scalar_prefetch = 0 : i64, scratch_operands = 1 : i64, tpu.core_type = #tpu.core_type<tc>, window_params = [{transform_indices = @transform_0, window_bounds = array<i64: 16, 128>}, {transform_indices = @transform_1, window_bounds = array<i64: 128, 512>}, {transform_indices = @transform_2, window_bounds = array<i64: 256, 128>}, {transform_indices = @transform_3, window_bounds = array<i64: 16, 128>}]} {
    %c0_i32 = arith.constant 0 : i32
    %0 = arith.cmpi eq, %arg1, %c0_i32 : i32
    %1 = arith.extui %0 : i1 to i32
    %c0_i32_0 = arith.constant 0 : i32
    %2 = arith.cmpi ne, %1, %c0_i32_0 : i32
    scf.if %2 {
      %cst_14 = arith.constant 0.000000e+00 : f32
      %25 = vector.broadcast %cst_14 : f32 to vector<16x128xf32>
      %c0_15 = arith.constant 0 : index
      %c0_16 = arith.constant 0 : index
      %26 = vector.load %arg6[%c0_15, %c0_16] : memref<16x128xf32, #tpu.memory_space<vmem>>, vector<16x128xf32>
      tpu.vector_store %arg6[%c0_15, %c0_16], %25 {strides = array<i32>} : memref<16x128xf32, #tpu.memory_space<vmem>>, vector<16x128xf32>,
    } else {
    }
    %c0 = arith.constant 0 : index
    %c0_1 = arith.constant 0 : index
    %3 = vector.load %arg2[%c0, %c0_1] : memref<16x128xf32, #tpu.memory_space<vmem>>, vector<16x128xf32>
    %4 = arith.truncf %3 : vector<16x128xf32> to vector<16x128xbf16>
    %c0_2 = arith.constant 0 : index
    %c0_3 = arith.constant 0 : index
    %5 = vector.load %arg3[%c0_2, %c0_3] : memref<128x512xbf16, #tpu.memory_space<vmem>>, vector<128x512xbf16>
    %cst = arith.constant dense<0.000000e+00> : vector<16x512xf32>
    %6 = tpu.matmul %4, %5, %cst {dimension_numbers = #tpu.dot_dimension_numbers<[1], [0], [0], [1], [0, 0, 1, 1], [], []>} : vector<16x128xbf16>, vector<128x512xbf16>, vector<16x512xf32> -> vector<16x512xf32>
    %7 = vector.extract_strided_slice %6 {offsets = [0, 0], sizes = [16, 256], strides = [1, 1]} : vector<16x512xf32> to vector<16x256xf32>
    %8 = vector.extract_strided_slice %6 {offsets = [0, 256], sizes = [16, 256], strides = [1, 1]} : vector<16x512xf32> to vector<16x256xf32>
    %9 = arith.negf %7 : vector<16x256xf32>
    %10 = math.exp %9 : vector<16x256xf32>
    %cst_4 = arith.constant 1.000000e+00 : f32
    %11 = vector.broadcast %cst_4 : f32 to vector<16x256xf32>
    %12 = arith.addf %11, %10 : vector<16x256xf32>
    %13 = arith.divf %11, %12 : vector<16x256xf32>
    %14 = arith.mulf %7, %13 : vector<16x256xf32>
    %15 = arith.mulf %14, %8 : vector<16x256xf32>
    %c0_5 = arith.constant 0 : index
    %c0_6 = arith.constant 0 : index
    %16 = vector.load %arg6[%c0_5, %c0_6] : memref<16x128xf32, #tpu.memory_space<vmem>>, vector<16x128xf32>
    %17 = arith.truncf %15 : vector<16x256xf32> to vector<16x256xbf16>
    %c0_7 = arith.constant 0 : index
    %c0_8 = arith.constant 0 : index
    %18 = vector.load %arg4[%c0_7, %c0_8] : memref<256x128xbf16, #tpu.memory_space<vmem>>, vector<256x128xbf16>
    %cst_9 = arith.constant dense<0.000000e+00> : vector<16x128xf32>
    %19 = tpu.matmul %17, %18, %cst_9 {dimension_numbers = #tpu.dot_dimension_numbers<[1], [0], [0], [1], [0, 0, 1, 1], [], []>} : vector<16x256xbf16>, vector<256x128xbf16>, vector<16x128xf32> -> vector<16x128xf32>
    %20 = arith.addf %16, %19 : vector<16x128xf32>
    %c0_10 = arith.constant 0 : index
    %c0_11 = arith.constant 0 : index
    %21 = vector.load %arg6[%c0_10, %c0_11] : memref<16x128xf32, #tpu.memory_space<vmem>>, vector<16x128xf32>
    tpu.vector_store %arg6[%c0_10, %c0_11], %20 {strides = array<i32>} : memref<16x128xf32, #tpu.memory_space<vmem>>, vector<16x128xf32>,
    %c0_i32_12 = arith.constant 0 : i32
    %22 = arith.cmpi eq, %arg1, %c0_i32_12 : i32
    %23 = arith.extui %22 : i1 to i32
    %c0_i32_13 = arith.constant 0 : i32
    %24 = arith.cmpi ne, %23, %c0_i32_13 : i32
    scf.if %24 {
      %c0_14 = arith.constant 0 : index
      %c0_15 = arith.constant 0 : index
      %25 = vector.load %arg6[%c0_14, %c0_15] : memref<16x128xf32, #tpu.memory_space<vmem>>, vector<16x128xf32>
      %26 = arith.truncf %25 : vector<16x128xf32> to vector<16x128xbf16>
      %c0_16 = arith.constant 0 : index
      %c0_17 = arith.constant 0 : index
      %27 = vector.load %arg5[%c0_16, %c0_17] : memref<16x128xbf16, #tpu.memory_space<vmem>>, vector<16x128xbf16>
      tpu.vector_store %arg5[%c0_16, %c0_17], %26 {strides = array<i32>} : memref<16x128xbf16, #tpu.memory_space<vmem>>, vector<16x128xbf16>,
    } else {
    }
    return
  }
  func.func @transform_0(%arg0: i32, %arg1: i32) -> (i32, i32) {
    %c0_i32 = arith.constant 0 : i32
    %c0_i32_0 = arith.constant 0 : i32
    return %arg0, %c0_i32 : i32, i32
  }
  func.func @transform_1(%arg0: i32, %arg1: i32) -> (i32, i32) {
    %c0_i32 = arith.constant 0 : i32
    %c0_i32_0 = arith.constant 0 : i32
    return %c0_i32, %arg1 : i32, i32
  }
  func.func @transform_2(%arg0: i32, %arg1: i32) -> (i32, i32) {
    %c0_i32 = arith.constant 0 : i32
    %c0_i32_0 = arith.constant 0 : i32
    return %arg1, %c0_i32 : i32, i32
  }
  func.func @transform_3(%arg0: i32, %arg1: i32) -> (i32, i32) {
    %c0_i32 = arith.constant 0 : i32
    %c0_i32_0 = arith.constant 0 : i32
    return %arg0, %c0_i32 : i32, i32
  }
}

</mosaic_0001>

<llo_original>
// kernel: tpu_custom_call.1
$region0: #{tpu_custom_call.1}
  #allocation0 [shape = 'u32[]', space=smem, size = 0x4, offset = 0x4, fixed_abs, tag = 'smem constant byte address 0x4 - core index']
  #allocation1 [shape = 'u32[72,128]{1,0:T(1,128)}', space=vmem, size = 0x9000, scoped, tag = 'internal scratch']
  #allocation2 [shape = 'f32[16,128]{1,0:T(8,128)}', space=vmem, size = 0x2000, scoped, tag = 'scratch operand']
  %s0 = inlined_call_operand.hbm [shape: f32[16,128], index: 0, kind: input, shape index: {}]
  %s1 = inlined_call_operand.hbm [shape: bf16[128,512], index: 1, kind: input, shape index: {}]
  %s2 = inlined_call_operand.hbm [shape: bf16[256,128], index: 2, kind: input, shape index: {}]
  %s3 = inlined_call_operand.hbm [shape: bf16[16,128], index: 3, kind: output, shape index: {}]
  %s4 = sld [smem:[#allocation0]]
  $region42: #{tpu_custom_call.1} parent=0
    _
  %s6 = ssub.s32 1, %s4
  %s7 = scalar_select 0, %s6, %s4
  $region1: #{tpu_custom_call.1} parent=0
    #allocation3 [shape = 'u8[8192]{0}', space=vmem, size = 0x2000, scoped, tag = 'input window, operand 0, single buffered']
    #allocation4 [shape = 's32[1]{0}', space=sflag, size = 0x4, scoped, tag = 'scoped memory for tpu_custom_call.1']
    #allocation5 [shape = 's32[1]{0}', space=sflag, size = 0x4, scoped, tag = 'scoped memory for tpu_custom_call.1']
    #allocation6 [shape = 'u8[131072]{0}', space=vmem, size = 0x20000, scoped, tag = 'input window, operand 1, single buffered']
    #allocation7 [shape = 's32[1]{0}', space=sflag, size = 0x4, scoped, tag = 'scoped memory for tpu_custom_call.1']
    #allocation8 [shape = 'u8[65536]{0}', space=vmem, size = 0x10000, scoped, tag = 'input window, operand 2, single buffered']
    #allocation9 [shape = 'u8[4096]{0}', space=vmem, size = 0x1000, scoped, tag = 'output window, operand 0, single buffered']
    %8 = vsyncpa [#allocation4], 0
    %9 = vsyncpa [#allocation7], 0
    %10 = vsyncpa [#allocation5], 0
    // Predicated region
    $region2: #{tpu_custom_call.1} parent=1 // pred_check
      _
    $region3: #{tpu_custom_call.1} parent=1 // pred_check_branch
      %12 = sbr.rel (0) target = $region5
    $region4: #{tpu_custom_call.1} parent=1 // pred_region
      %14 = vsyncadd [#allocation4], 0
      %s15 = sshll.u32 %s0, 4
      %s16 = int_to_ptr.hbm [resolvable:$true] %s15
      %s17 = sshll.u32 [#allocation3], 4
      %s18 = int_to_ptr.vmem [resolvable:$true] %s17
      %23 = dma.hbm_to_vmem [thread:$0]  %s16, 256, %s18, [#allocation4], 128, 128, 8
    $region5: #{tpu_custom_call.1} parent=1 // pred_fallthru
      _
    // Predicated region
    $region6: #{tpu_custom_call.1} parent=1 // pred_check
      _
    $region7: #{tpu_custom_call.1} parent=1 // pred_check_branch
      %25 = sbr.rel (0) target = $region9
    $region8: #{tpu_custom_call.1} parent=1 // pred_region
      %27 = vsyncadd [#allocation7], 0
      %s28 = sshll.u32 %s1, 4
      %s29 = int_to_ptr.hbm [resolvable:$true] %s28
      %s30 = sshll.u32 [#allocation6], 4
      %s31 = int_to_ptr.vmem [resolvable:$true] %s30
      %36 = dma.hbm_to_vmem [thread:$0]  %s29, 4096, %s31, [#allocation7], 256, 256, 16
    $region9: #{tpu_custom_call.1} parent=1 // pred_fallthru
      _
    // Predicated region
    $region10: #{tpu_custom_call.1} parent=1 // pred_check
      _
    $region11: #{tpu_custom_call.1} parent=1 // pred_check_branch
      %38 = sbr.rel (0) target = $region13
    $region12: #{tpu_custom_call.1} parent=1 // pred_region
      %40 = vsyncadd [#allocation7], 0
      %s41 = sshll.u32 %s2, 4
      %s42 = int_to_ptr.hbm [resolvable:$true] %s41
      %s43 = sshll.u32 [#allocation8], 4
      %s44 = int_to_ptr.vmem [resolvable:$true] %s43
      %49 = dma.hbm_to_vmem [thread:$0]  %s42, 2048, %s44, [#allocation7], 64, 64, 4
    $region13: #{tpu_custom_call.1} parent=1 // pred_fallthru
      _
    // Predicated region
    $region14: #{tpu_custom_call.1} parent=1 // pred_check
      _
    $region15: #{tpu_custom_call.1} parent=1 // pred_check_branch
      %51 = sbr.rel (0) target = $region17
    $region16: #{tpu_custom_call.1} parent=1 // pred_region
      %53 = dma.done [#allocation4], 256
    $region17: #{tpu_custom_call.1} parent=1 // pred_fallthru
      _
    // Predicated region
    $region18: #{tpu_custom_call.1} parent=1 // pred_check
      _
    $region19: #{tpu_custom_call.1} parent=1 // pred_check_branch
      %55 = sbr.rel (0) target = $region21
    $region20: #{tpu_custom_call.1} parent=1 // pred_region
      %57 = dma.done [#allocation7], 4096
    $region21: #{tpu_custom_call.1} parent=1 // pred_fallthru
      _
    // Predicated region
    $region22: #{tpu_custom_call.1} parent=1 // pred_check
      _
    $region23: #{tpu_custom_call.1} parent=1 // pred_check_branch
      %59 = sbr.rel (0) target = $region25
    $region24: #{tpu_custom_call.1} parent=1 // pred_region
      %61 = dma.done [#allocation7], 2048
    $region25: #{tpu_custom_call.1} parent=1 // pred_fallthru
      _
    %p62 = scmp.eq.s32.totalorder 0, 0
    // Predicated region
    $region26: #{tpu_custom_call.1} parent=1 // pred_check
      %p63 = pneg %p62
    $region27: #{tpu_custom_call.1} parent=1 // pred_check_branch
      %65 = sbr.rel (%p63) target = $region29
    $region28: #{tpu_custom_call.1} parent=1 // pred_region
      %66 = vst [vmem:[#allocation2] sm:$0xff] 0.0
      %67 = vst [vmem:[#allocation2 + $0x8] sm:$0xff] 0.0
    $region29: #{tpu_custom_call.1} parent=1 // pred_fallthru
      _
    %v68 = vld [vmem:[#allocation3] sm:$0xff]
    %v69 = vld [vmem:[#allocation3 + $0x8] sm:$0xff]
    %v70 = vpack.c.bf16 %v69, %v68
    %v71 = vld [vmem:[#allocation6] sm:$0xff]
    %v72 = vld [vmem:[#allocation6 + $0x8] sm:$0xff]
    %v73 = vld [vmem:[#allocation6 + $0x10] sm:$0xff]
    %v74 = vld [vmem:[#allocation6 + $0x18] sm:$0xff]
    %v75 = vld [vmem:[#allocation6 + $0x20] sm:$0xff]
    %v76 = vld [vmem:[#allocation6 + $0x28] sm:$0xff]
    %v77 = vld [vmem:[#allocation6 + $0x30] sm:$0xff]
    %v78 = vld [vmem:[#allocation6 + $0x38] sm:$0xff]
    %v79 = vld [vmem:[#allocation6 + $0x40] sm:$0xff]
    %v80 = vld [vmem:[#allocation6 + $0x48] sm:$0xff]
    %v81 = vld [vmem:[#allocation6 + $0x50] sm:$0xff]
    %v82 = vld [vmem:[#allocation6 + $0x58] sm:$0xff]
    %v83 = vld [vmem:[#allocation6 + $0x60] sm:$0xff]
    %v84 = vld [vmem:[#allocation6 + $0x68] sm:$0xff]
    %v85 = vld [vmem:[#allocation6 + $0x70] sm:$0xff]
    %v86 = vld [vmem:[#allocation6 + $0x78] sm:$0xff]
    %v87 = vld [vmem:[#allocation6 + $0x80] sm:$0xff]
    %v88 = vld [vmem:[#allocation6 + $0x88] sm:$0xff]
    %v89 = vld [vmem:[#allocation6 + $0x90] sm:$0xff]
    %v90 = vld [vmem:[#allocation6 + $0x98] sm:$0xff]
    %v91 = vld [vmem:[#allocation6 + $0xa0] sm:$0xff]
    %v92 = vld [vmem:[#allocation6 + $0xa8] sm:$0xff]
    %v93 = vld [vmem:[#allocation6 + $0xb0] sm:$0xff]
    %v94 = vld [vmem:[#allocation6 + $0xb8] sm:$0xff]
    %v95 = vld [vmem:[#allocation6 + $0xc0] sm:$0xff]
    %v96 = vld [vmem:[#allocation6 + $0xc8] sm:$0xff]
    %v97 = vld [vmem:[#allocation6 + $0xd0] sm:$0xff]
    %v98 = vld [vmem:[#allocation6 + $0xd8] sm:$0xff]
    %v99 = vld [vmem:[#allocation6 + $0xe0] sm:$0xff]
    %v100 = vld [vmem:[#allocation6 + $0xe8] sm:$0xff]
    %v101 = vld [vmem:[#allocation6 + $0xf0] sm:$0xff]
    %v102 = vld [vmem:[#allocation6 + $0xf8] sm:$0xff]
    %v135 = vunpack.c.l.b16 %v71
    %v136 = vunpack.c.h.b16 %v71
    %v137 = vunpack.c.l.b16 %v72
    %v138 = vunpack.c.h.b16 %v72
    %v139 = vunpack.c.l.b16 %v73
    %v140 = vunpack.c.h.b16 %v73
    %v141 = vunpack.c.l.b16 %v74
    %v142 = vunpack.c.h.b16 %v74
    %v143 = vunpack.c.l.b16 %v75
    %v144 = vunpack.c.h.b16 %v75
    %v145 = vunpack.c.l.b16 %v76
    %v146 = vunpack.c.h.b16 %v76
    %v147 = vunpack.c.l.b16 %v77
    %v148 = vunpack.c.h.b16 %v77
    %v149 = vunpack.c.l.b16 %v78
    %v150 = vunpack.c.h.b16 %v78
    %v151 = vunpack.c.l.b16 %v79
    %v152 = vunpack.c.h.b16 %v79
    %v153 = vunpack.c.l.b16 %v80
    %v154 = vunpack.c.h.b16 %v80
    %v155 = vunpack.c.l.b16 %v81
    %v156 = vunpack.c.h.b16 %v81
    %v157 = vunpack.c.l.b16 %v82
    %v158 = vunpack.c.h.b16 %v82
    %v159 = vunpack.c.l.b16 %v83
    %v160 = vunpack.c.h.b16 %v83
    %v161 = vunpack.c.l.b16 %v84
    %v162 = vunpack.c.h.b16 %v84
    %v163 = vunpack.c.l.b16 %v85
    %v164 = vunpack.c.h.b16 %v85
    %v165 = vunpack.c.l.b16 %v86
    %v166 = vunpack.c.h.b16 %v86
    %v167 = vunpack.c.l.b16 %v87
    %v168 = vunpack.c.h.b16 %v87
    %v169 = vunpack.c.l.b16 %v88
    %v170 = vunpack.c.h.b16 %v88
    %v171 = vunpack.c.l.b16 %v89
    %v172 = vunpack.c.h.b16 %v89
    %v173 = vunpack.c.l.b16 %v90
    %v174 = vunpack.c.h.b16 %v90
    %v175 = vunpack.c.l.b16 %v91
    %v176 = vunpack.c.h.b16 %v91
    %v177 = vunpack.c.l.b16 %v92
    %v178 = vunpack.c.h.b16 %v92
    %v179 = vunpack.c.l.b16 %v93
    %v180 = vunpack.c.h.b16 %v93
    %v181 = vunpack.c.l.b16 %v94
    %v182 = vunpack.c.h.b16 %v94
    %v183 = vunpack.c.l.b16 %v95
    %v184 = vunpack.c.h.b16 %v95
    %v185 = vunpack.c.l.b16 %v96
    %v186 = vunpack.c.h.b16 %v96
    %v187 = vunpack.c.l.b16 %v97
    %v188 = vunpack.c.h.b16 %v97
    %v189 = vunpack.c.l.b16 %v98
    %v190 = vunpack.c.h.b16 %v98
    %v191 = vunpack.c.l.b16 %v99
    %v192 = vunpack.c.h.b16 %v99
    %v193 = vunpack.c.l.b16 %v100
    %v194 = vunpack.c.h.b16 %v100
    %v195 = vunpack.c.l.b16 %v101
    %v196 = vunpack.c.h.b16 %v101
    %v197 = vunpack.c.l.b16 %v102
    %v198 = vunpack.c.h.b16 %v102
    %v199 = vpack.c.b16 %v139, %v135
    %v200 = vpack.c.b16 %v140, %v136
    %v201 = vpack.c.b16 %v141, %v137
    %v202 = vpack.c.b16 %v142, %v138
    %v203 = vpack.c.b16 %v147, %v143
    %v204 = vpack.c.b16 %v148, %v144
    %v205 = vpack.c.b16 %v149, %v145
    %v206 = vpack.c.b16 %v150, %v146
    %v207 = vpack.c.b16 %v155, %v151
    %v208 = vpack.c.b16 %v156, %v152
    %v209 = vpack.c.b16 %v157, %v153
    %v210 = vpack.c.b16 %v158, %v154
    %v211 = vpack.c.b16 %v163, %v159
    %v212 = vpack.c.b16 %v164, %v160
    %v213 = vpack.c.b16 %v165, %v161
    %v214 = vpack.c.b16 %v166, %v162
    %v215 = vpack.c.b16 %v171, %v167
    %v216 = vpack.c.b16 %v172, %v168
    %v217 = vpack.c.b16 %v173, %v169
    %v218 = vpack.c.b16 %v174, %v170
    %v219 = vpack.c.b16 %v179, %v175
    %v220 = vpack.c.b16 %v180, %v176
    %v221 = vpack.c.b16 %v181, %v177
    %v222 = vpack.c.b16 %v182, %v178
    %v223 = vpack.c.b16 %v187, %v183
    %v224 = vpack.c.b16 %v188, %v184
    %v225 = vpack.c.b16 %v189, %v185
    %v226 = vpack.c.b16 %v190, %v186
    %v227 = vpack.c.b16 %v195, %v191
    %v228 = vpack.c.b16 %v196, %v192
    %v229 = vpack.c.b16 %v197, %v193
    %v230 = vpack.c.b16 %v198, %v194
    %263 = vmatpush.bf16.msra.mxu0 %v227
    %264 = vmatpush.bf16.msra.mxu0 %v223
    %265 = vmatpush.bf16.msra.mxu0 %v219
    %266 = vmatpush.bf16.msra.mxu0 %v215
    %267 = vmatpush.bf16.msra.mxu0 %v211
    %268 = vmatpush.bf16.msra.mxu0 %v207
    %269 = vmatpush.bf16.msra.mxu0 %v203
    %270 = vmatpush.bf16.msra.mxu0 %v199
    %271 = vmatmul.bf16.gmra.mxu0 %v70
    %v272 = vpop.f32.mrf.mxu0
    %v273 = vadd.f32 0.0, %v272
    %v274 = vpop.f32.mrf.mxu0
    %v275 = vadd.f32 0.0, %v274
    %276 = vdwg.mxu0
    %277 = vmatpush.bf16.msra.mxu0 %v228
    %278 = vmatpush.bf16.msra.mxu0 %v224
    %279 = vmatpush.bf16.msra.mxu0 %v220
    %280 = vmatpush.bf16.msra.mxu0 %v216
    %281 = vmatpush.bf16.msra.mxu0 %v212
    %282 = vmatpush.bf16.msra.mxu0 %v208
    %283 = vmatpush.bf16.msra.mxu0 %v204
    %284 = vmatpush.bf16.msra.mxu0 %v200
    %285 = vmatmul.bf16.gmra.mxu0 %v70
    %v286 = vpop.f32.mrf.mxu0
    %v287 = vadd.f32 0.0, %v286
    %v288 = vpop.f32.mrf.mxu0
    %v289 = vadd.f32 0.0, %v288
    %290 = vdwg.mxu0
    %291 = vmatpush.bf16.msra.mxu0 %v229
    %292 = vmatpush.bf16.msra.mxu0 %v225
    %293 = vmatpush.bf16.msra.mxu0 %v221
    %294 = vmatpush.bf16.msra.mxu0 %v217
    %295 = vmatpush.bf16.msra.mxu0 %v213
    %296 = vmatpush.bf16.msra.mxu0 %v209
    %297 = vmatpush.bf16.msra.mxu0 %v205
    %298 = vmatpush.bf16.msra.mxu0 %v201
    %299 = vmatmul.bf16.gmra.mxu0 %v70
    %v300 = vpop.f32.mrf.mxu0
    %v301 = vadd.f32 0.0, %v300
    %v302 = vpop.f32.mrf.mxu0
    %v303 = vadd.f32 0.0, %v302
    %304 = vdwg.mxu0
    %305 = vmatpush.bf16.msra.mxu0 %v230
    %306 = vmatpush.bf16.msra.mxu0 %v226
    %307 = vmatpush.bf16.msra.mxu0 %v222
    %308 = vmatpush.bf16.msra.mxu0 %v218
    %309 = vmatpush.bf16.msra.mxu0 %v214
    %310 = vmatpush.bf16.msra.mxu0 %v210
    %311 = vmatpush.bf16.msra.mxu0 %v206
    %312 = vmatpush.bf16.msra.mxu0 %v202
    %313 = vmatmul.bf16.gmra.mxu0 %v70
    %v314 = vpop.f32.mrf.mxu0
    %v315 = vadd.f32 0.0, %v314
    %v316 = vpop.f32.mrf.mxu0
    %v317 = vadd.f32 0.0, %v316
    %318 = vdwg.mxu0
    %v319 = vxor.u32 %v273, 2147483648
    %v320 = vxor.u32 %v287, 2147483648
    %v321 = vxor.u32 %v275, 2147483648
    %v322 = vxor.u32 %v289, 2147483648
    %v323 = vmul.f32 %v319, 1.442695
    %v324 = vpow.pop %v323
    %v325 = vmul.f32 %v320, 1.442695
    %v326 = vpow.pop %v325
    %v327 = vmul.f32 %v321, 1.442695
    %v328 = vpow.pop %v327
    %v329 = vmul.f32 %v322, 1.442695
    %v330 = vpow.pop %v329
    %v331 = vadd.f32 %v324, 1.0
    %v332 = vadd.f32 %v326, 1.0
    %v333 = vadd.f32 %v328, 1.0
    %v334 = vadd.f32 %v330, 1.0
    %v335 = vrcp.pop %v331
    %v336 = vmul.f32 %v331, %v335
    %v337 = vsub.f32 1.0, %v336
    %v338 = vmul.f32 %v335, %v337
    %v339 = vadd.f32 %v335, %v338
    %vm340 = vweird.f32 %v331
    %vm341 = vweird.f32 %v335
    %vm342 = vmor %vm340, %vm341
    %v343 = vsel %vm342, %v335, %v339
    %v344 = vand.u32 2147483647, %v331
    %vm345 = vcmp.eq.f32.partialorder %v344, 8.507059e+37
    %v346 = vand.u32 %v331, 2147483648
    %v347 = vor.u32 1.1754944e-38, %v346
    %v348 = vsel %vm345, %v347, %v343
    %v349 = vmul.f32 1.0, %v348
    %v350 = vrcp.pop %v332
    %v351 = vmul.f32 %v332, %v350
    %v352 = vsub.f32 1.0, %v351
    %v353 = vmul.f32 %v350, %v352
    %v354 = vadd.f32 %v350, %v353
    %vm355 = vweird.f32 %v332
    %vm356 = vweird.f32 %v350
    %vm357 = vmor %vm355, %vm356
    %v358 = vsel %vm357, %v350, %v354
    %v359 = vand.u32 2147483647, %v332
    %vm360 = vcmp.eq.f32.partialorder %v359, 8.507059e+37
    %v361 = vand.u32 %v332, 2147483648
    %v362 = vor.u32 1.1754944e-38, %v361
    %v363 = vsel %vm360, %v362, %v358
    %v364 = vmul.f32 1.0, %v363
    %v365 = vrcp.pop %v333
    %v366 = vmul.f32 %v333, %v365
    %v367 = vsub.f32 1.0, %v366
    %v368 = vmul.f32 %v365, %v367
    %v369 = vadd.f32 %v365, %v368
    %vm370 = vweird.f32 %v333
    %vm371 = vweird.f32 %v365
    %vm372 = vmor %vm370, %vm371
    %v373 = vsel %vm372, %v365, %v369
    %v374 = vand.u32 2147483647, %v333
    %vm375 = vcmp.eq.f32.partialorder %v374, 8.507059e+37
    %v376 = vand.u32 %v333, 2147483648
    %v377 = vor.u32 1.1754944e-38, %v376
    %v378 = vsel %vm375, %v377, %v373
    %v379 = vmul.f32 1.0, %v378
    %v380 = vrcp.pop %v334
    %v381 = vmul.f32 %v334, %v380
    %v382 = vsub.f32 1.0, %v381
    %v383 = vmul.f32 %v380, %v382
    %v384 = vadd.f32 %v380, %v383
    %vm385 = vweird.f32 %v334
    %vm386 = vweird.f32 %v380
    %vm387 = vmor %vm385, %vm386
    %v388 = vsel %vm387, %v380, %v384
    %v389 = vand.u32 2147483647, %v334
    %vm390 = vcmp.eq.f32.partialorder %v389, 8.507059e+37
    %v391 = vand.u32 %v334, 2147483648
    %v392 = vor.u32 1.1754944e-38, %v391
    %v393 = vsel %vm390, %v392, %v388
    %v394 = vmul.f32 1.0, %v393
    %v395 = vmul.f32 %v273, %v349
    %v396 = vmul.f32 %v287, %v364
    %v397 = vmul.f32 %v275, %v379
    %v398 = vmul.f32 %v289, %v394
    %v399 = vmul.f32 %v395, %v301
    %v400 = vmul.f32 %v396, %v315
    %v401 = vmul.f32 %v397, %v303
    %v402 = vmul.f32 %v398, %v317
    %v403 = vld [vmem:[#allocation2] sm:$0xff]
    %v404 = vld [vmem:[#allocation2 + $0x8] sm:$0xff]
    %v405 = vpack.c.bf16 %v401, %v399
    %v406 = vpack.c.bf16 %v402, %v400
    %v407 = vld [vmem:[#allocation8] sm:$0xf]
    %v408 = vld [vmem:[#allocation8 + $0x4] sm:$0xf]
    %v409 = vld [vmem:[#allocation8 + $0x8] sm:$0xf]
    %v410 = vld [vmem:[#allocation8 + $0xc] sm:$0xf]
    %v411 = vld [vmem:[#allocation8 + $0x10] sm:$0xf]
    %v412 = vld [vmem:[#allocation8 + $0x14] sm:$0xf]
    %v413 = vld [vmem:[#allocation8 + $0x18] sm:$0xf]
    %v414 = vld [vmem:[#allocation8 + $0x1c] sm:$0xf]
    %v415 = vld [vmem:[#allocation8 + $0x20] sm:$0xf]
    %v416 = vld [vmem:[#allocation8 + $0x24] sm:$0xf]
    %v417 = vld [vmem:[#allocation8 + $0x28] sm:$0xf]
    %v418 = vld [vmem:[#allocation8 + $0x2c] sm:$0xf]
    %v419 = vld [vmem:[#allocation8 + $0x30] sm:$0xf]
    %v420 = vld [vmem:[#allocation8 + $0x34] sm:$0xf]
    %v421 = vld [vmem:[#allocation8 + $0x38] sm:$0xf]
    %v422 = vld [vmem:[#allocation8 + $0x3c] sm:$0xf]
    %v423 = vld [vmem:[#allocation8 + $0x40] sm:$0xf]
    %v424 = vld [vmem:[#allocation8 + $0x44] sm:$0xf]
    %v425 = vld [vmem:[#allocation8 + $0x48] sm:$0xf]
    %v426 = vld [vmem:[#allocation8 + $0x4c] sm:$0xf]
    %v427 = vld [vmem:[#allocation8 + $0x50] sm:$0xf]
    %v428 = vld [vmem:[#allocation8 + $0x54] sm:$0xf]
    %v429 = vld [vmem:[#allocation8 + $0x58] sm:$0xf]
    %v430 = vld [vmem:[#allocation8 + $0x5c] sm:$0xf]
    %v431 = vld [vmem:[#allocation8 + $0x60] sm:$0xf]
    %v432 = vld [vmem:[#allocation8 + $0x64] sm:$0xf]
    %v433 = vld [vmem:[#allocation8 + $0x68] sm:$0xf]
    %v434 = vld [vmem:[#allocation8 + $0x6c] sm:$0xf]
    %v435 = vld [vmem:[#allocation8 + $0x70] sm:$0xf]
    %v436 = vld [vmem:[#allocation8 + $0x74] sm:$0xf]
    %v437 = vld [vmem:[#allocation8 + $0x78] sm:$0xf]
    %v438 = vld [vmem:[#allocation8 + $0x7c] sm:$0xf]
    %v471 = vunpack.c.l.b16 %v407
    %v472 = vunpack.c.l.b16 %v408
    %v473 = vunpack.c.l.b16 %v409
    %v474 = vunpack.c.l.b16 %v410
    %v475 = vunpack.c.l.b16 %v411
    %v476 = vunpack.c.l.b16 %v412
    %v477 = vunpack.c.l.b16 %v413
    %v478 = vunpack.c.l.b16 %v414
    %v479 = vunpack.c.l.b16 %v415
    %v480 = vunpack.c.l.b16 %v416
    %v481 = vunpack.c.l.b16 %v417
    %v482 = vunpack.c.l.b16 %v418
    %v483 = vunpack.c.l.b16 %v419
    %v484 = vunpack.c.l.b16 %v420
    %v485 = vunpack.c.l.b16 %v421
    %v486 = vunpack.c.l.b16 %v422
    %v487 = vunpack.c.l.b16 %v423
    %v488 = vunpack.c.l.b16 %v424
    %v489 = vunpack.c.l.b16 %v425
    %v490 = vunpack.c.l.b16 %v426
    %v491 = vunpack.c.l.b16 %v427
    %v492 = vunpack.c.l.b16 %v428
    %v493 = vunpack.c.l.b16 %v429
    %v494 = vunpack.c.l.b16 %v430
    %v495 = vunpack.c.l.b16 %v431
    %v496 = vunpack.c.l.b16 %v432
    %v497 = vunpack.c.l.b16 %v433
    %v498 = vunpack.c.l.b16 %v434
    %v499 = vunpack.c.l.b16 %v435
    %v500 = vunpack.c.l.b16 %v436
    %v501 = vunpack.c.l.b16 %v437
    %v502 = vunpack.c.l.b16 %v438
    %v503 = vpack.c.b16 %v472, %v471
    %v504 = vpack.c.b16 %v474, %v473
    %v505 = vpack.c.b16 %v476, %v475
    %v506 = vpack.c.b16 %v478, %v477
    %v507 = vpack.c.b16 %v480, %v479
    %v508 = vpack.c.b16 %v482, %v481
    %v509 = vpack.c.b16 %v484, %v483
    %v510 = vpack.c.b16 %v486, %v485
    %v511 = vpack.c.b16 %v488, %v487
    %v512 = vpack.c.b16 %v490, %v489
    %v513 = vpack.c.b16 %v492, %v491
    %v514 = vpack.c.b16 %v494, %v493
    %v515 = vpack.c.b16 %v496, %v495
    %v516 = vpack.c.b16 %v498, %v497
    %v517 = vpack.c.b16 %v500, %v499
    %v518 = vpack.c.b16 %v502, %v501
    %535 = vmatpush.bf16.msra.mxu0 %v510
    %536 = vmatpush.bf16.msra.mxu0 %v509
    %537 = vmatpush.bf16.msra.mxu0 %v508
    %538 = vmatpush.bf16.msra.mxu0 %v507
    %539 = vmatpush.bf16.msra.mxu0 %v506
    %540 = vmatpush.bf16.msra.mxu0 %v505
    %541 = vmatpush.bf16.msra.mxu0 %v504
    %542 = vmatpush.bf16.msra.mxu0 %v503
    %543 = vmatmul.bf16.gmra.mxu0 %v405
    %v544 = vpop.f32.mrf.mxu0
    %v545 = vadd.f32 0.0, %v544
    %v546 = vpop.f32.mrf.mxu0
    %v547 = vadd.f32 0.0, %v546
    %548 = vdwg.mxu0
    %549 = vmatpush.bf16.msra.mxu0 %v518
    %550 = vmatpush.bf16.msra.mxu0 %v517
    %551 = vmatpush.bf16.msra.mxu0 %v516
    %552 = vmatpush.bf16.msra.mxu0 %v515
    %553 = vmatpush.bf16.msra.mxu0 %v514
    %554 = vmatpush.bf16.msra.mxu0 %v513
    %555 = vmatpush.bf16.msra.mxu0 %v512
    %556 = vmatpush.bf16.msra.mxu0 %v511
    %557 = vmatmul.bf16.gmra.mxu0 %v406
    %v558 = vpop.f32.mrf.mxu0
    %v559 = vadd.f32 %v545, %v558
    %v560 = vpop.f32.mrf.mxu0
    %v561 = vadd.f32 %v547, %v560
    %562 = vdwg.mxu0
    %v563 = vadd.f32 %v403, %v559
    %v564 = vadd.f32 %v404, %v561
    %565 = vst [vmem:[#allocation2] sm:$0xff] %v563
    %566 = vst [vmem:[#allocation2 + $0x8] sm:$0xff] %v564
    // Predicated region
    $region30: #{tpu_custom_call.1} parent=1 // pred_check
      %p567 = pneg %p62
    $region31: #{tpu_custom_call.1} parent=1 // pred_check_branch
      %569 = sbr.rel (%p567) target = $region33
    $region32: #{tpu_custom_call.1} parent=1 // pred_region
      %v570 = vld [vmem:[#allocation2] sm:$0xff]
      %v571 = vld [vmem:[#allocation2 + $0x8] sm:$0xff]
      %v572 = vpack.c.bf16 %v570, %v570
      %v573 = vpack.c.bf16 %v571, %v571
      %574 = vst [vmem:[#allocation9] sm:$0xf] %v572
      %575 = vst [vmem:[#allocation9 + $0x4] sm:$0xf] %v573
    $region33: #{tpu_custom_call.1} parent=1 // pred_fallthru
      _
    // Predicated region
    $region34: #{tpu_custom_call.1} parent=1 // pred_check
      _
    $region35: #{tpu_custom_call.1} parent=1 // pred_check_branch
      %577 = sbr.rel (0) target = $region37
    $region36: #{tpu_custom_call.1} parent=1 // pred_region
      %579 = vsyncadd [#allocation5], 0
      %s580 = sshll.u32 [#allocation9], 4
      %s581 = int_to_ptr.vmem [resolvable:$true] %s580
      %s582 = sshll.u32 %s3, 4
      %s583 = int_to_ptr.hbm [resolvable:$true] %s582
      %588 = dma.vmem_to_hbm [thread:$0]  %s581, 128, %s583, [#allocation5], 64, 64, 4
    $region37: #{tpu_custom_call.1} parent=1 // pred_fallthru
      _
    // Predicated region
    $region38: #{tpu_custom_call.1} parent=1 // pred_check
      _
    $region39: #{tpu_custom_call.1} parent=1 // pred_check_branch
      %590 = sbr.rel (0) target = $region41
    $region40: #{tpu_custom_call.1} parent=1 // pred_region
      %592 = dma.done [#allocation5], 128
    $region41: #{tpu_custom_call.1} parent=1 // pred_fallthru
      _
    %593 = vsyncpa [#allocation4], 1
    %594 = vsyncpa [#allocation7], 1
    %595 = vsyncpa [#allocation5], 1

</llo_original>
